<compile_context>
chip_gen: v7x
topology: tpu7x:2x2x1
jax: 0.10.0
libtpu: 0.0.40
codegen_flags: <defaults>
</compile_context>

<pallas_src>
from typing import NamedTuple

import jax
import jax.numpy as jnp
import numpy as np
from jax.experimental import pallas as pl
from jax.experimental.pallas import tpu as pltpu


def _round_up(a: int, b: int) -> int:
    return (a + b - 1) // b * b


# ---------------------------------------------------------------------------
# One-time weight packing (module init — outside the per-call hot path).
# ---------------------------------------------------------------------------

class PackedProjection(NamedTuple):
    w: jax.Array   # (K_pad, N_pad) pre-transposed/concatenated/padded, MXU dtype
    b: jax.Array   # (1, N_pad) float32 bias (zero-padded)
    k: int         # true contraction dim
    n: int         # true output dim
    tk: int        # K tile used by the kernel


def _choose_k_tiling(K: int, max_tk: int):
    if K <= max_tk:
        return K, K                       # full-K block, no padding needed
    return _round_up(K, max_tk), max_tk   # pad K, tile at max_tk (mult. of 128)


def pack_projection(weights, biases, *, mxu_dtype=jnp.bfloat16, max_tk=512):
    """Pack PyTorch-layout (Nout_i, K) weights into one lane-dense matrix.

    Done once at init: transpose, concatenate along the output axis, pad the
    output dim to a multiple of 128 and (if needed) K to a multiple of the K
    tile, and cast to the MXU feed dtype (bf16 by default, halving HBM weight
    traffic per forward).
    """
    w_t = jnp.concatenate([jnp.asarray(w).T for w in weights], axis=1)  # (K, Nout)
    b = jnp.concatenate([jnp.asarray(bb) for bb in biases])
    K, Nout = w_t.shape
    K_pad, tk = _choose_k_tiling(K, max_tk)
    N_pad = _round_up(Nout, 128)
    w_p = jnp.pad(w_t, ((0, K_pad - K), (0, N_pad - Nout))).astype(mxu_dtype)
    b_p = jnp.pad(b, (0, N_pad - Nout)).astype(jnp.float32).reshape(1, N_pad)
    return PackedProjection(w=w_p, b=b_p, k=K, n=Nout, tk=tk)


# ---------------------------------------------------------------------------
# Pallas kernel: tiled (M, K) @ (K, N) + bias with K-axis accumulation.
# ---------------------------------------------------------------------------

def _make_matmul_bias_kernel(mxu_dtype):
    def kernel(x_ref, w_ref, b_ref, o_ref, acc_ref):
        k = pl.program_id(2)

        @pl.when(k == 0)
        def _init():
            acc_ref[...] = jnp.zeros_like(acc_ref)

        # bf16 (or f32) MXU feed, f32 accumulation.
        acc_ref[...] += jnp.dot(
            x_ref[...].astype(mxu_dtype),
            w_ref[...].astype(mxu_dtype),
            preferred_element_type=jnp.float32)

        @pl.when(k == pl.num_programs(2) - 1)
        def _finalize():
            # Epilogue (bias add + cast) in f32 — v5e VPU has no bf16.
            o_ref[...] = (acc_ref[...] + b_ref[...]).astype(o_ref.dtype)

    return kernel


def _choose_tm(m8: int, tm_max: int):
    """Pick a row tile that keeps padding waste small (<= ~12.5%)."""
    if m8 <= tm_max:
        return m8, m8                      # single full-height tile, zero waste
    best_tm, best_pad = None, None
    for tm in (tm_max, 512, 256, 128):
        if tm > tm_max:
            continue
        mp = _round_up(m8, tm)
        if best_pad is None or mp < best_pad or (mp == best_pad and tm > best_tm):
            best_tm, best_pad = tm, mp
        if mp - m8 <= max(m8 // 8, 8):
            return tm, mp
    return best_tm, best_pad


def matmul_bias_packed(x2d, packed: PackedProjection, *, tm_max=512):
    """(M, K) @ packed.w + packed.b -> (M, packed.n), via one pallas_call."""
    M, K = x2d.shape
    if K != packed.k:
        raise ValueError(f"contraction mismatch: x has K={K}, packed K={packed.k}")

    K_pad, N_pad = packed.w.shape
    TK = packed.tk
    TN = next(t for t in (512, 256, 128) if t <= N_pad and N_pad % t == 0)

    M8 = _round_up(max(M, 1), 8)
    TM, M_pad = _choose_tm(M8, tm_max)

    xp = x2d
    if (M_pad, K_pad) != (M, K):
        xp = jnp.pad(x2d, ((0, M_pad - M), (0, K_pad - K)))

    grid_m, grid_n, grid_k = M_pad // TM, N_pad // TN, K_pad // TK

    x_isz = jnp.dtype(x2d.dtype).itemsize
    w_isz = jnp.dtype(packed.w.dtype).itemsize
    x_bytes = M_pad * K_pad * x_isz
    w_bytes = K_pad * N_pad * w_isz

    # Pick the reuse direction when K fits in one block: hold the smaller
    # re-stream cost resident across the inner grid axis.
    if grid_k == 1:
        weights_resident = (w_bytes + grid_n * x_bytes) < (grid_m * w_bytes + x_bytes)
    else:
        weights_resident = False

    if weights_resident:
        grid = (grid_n, grid_m, grid_k)
        x_map = lambda j, i, k: (i, k)
        w_map = lambda j, i, k: (k, j)
        b_map = lambda j, i, k: (0, j)
        o_map = lambda j, i, k: (i, j)
    else:
        grid = (grid_m, grid_n, grid_k)
        x_map = lambda i, j, k: (i, k)
        w_map = lambda i, j, k: (k, j)
        b_map = lambda i, j, k: (0, j)
        o_map = lambda i, j, k: (i, j)

    out_isz = jnp.dtype(x2d.dtype).itemsize
    vmem_needed = (2 * (TM * TK * x_isz + TK * TN * w_isz + TN * 4)   # dbl-buffered ins
                   + 2 * TM * TN * out_isz                            # dbl-buffered out
                   + TM * TN * 4)                                     # f32 accumulator
    vmem_limit = int(min(max(2 * vmem_needed, 24 << 20), 48 << 20))   # fits v7x 64 MiB

    out = pl.pallas_call(
        _make_matmul_bias_kernel(packed.w.dtype),
        out_shape=jax.ShapeDtypeStruct((M_pad, N_pad), x2d.dtype),
        grid_spec=pltpu.PrefetchScalarGridSpec(
            num_scalar_prefetch=0,
            grid=grid,
            in_specs=[
                pl.BlockSpec((TM, TK), x_map),
                pl.BlockSpec((TK, TN), w_map),
                pl.BlockSpec((1, TN), b_map),
            ],
            out_specs=pl.BlockSpec((TM, TN), o_map),
            scratch_shapes=[pltpu.VMEM((TM, TN), jnp.float32)],
        ),
        compiler_params=pltpu.CompilerParams(
            dimension_semantics=("parallel", "parallel", "arbitrary"),
            vmem_limit_bytes=vmem_limit,
        ),
    )(xp, packed.w, packed.b)

    return out[:M, :packed.n]


# ---------------------------------------------------------------------------
# Module-level wrapper (matches LinearProjection.forward).
# ---------------------------------------------------------------------------

def init_linear_projection(wq, bq, wkv, bkv, *, mxu_dtype=jnp.bfloat16, max_tk=512):
    """One-time packing of the projection weights (nn.Linear layout (out, in))."""
    inner, dim = wq.shape
    assert wkv.shape == (2 * inner, dim), (wkv.shape, inner, dim)
    return {
        "inner": inner,
        "dim": dim,
        # Fused q|k|v packing for the self-attention (attn_kv=None) path.
        "qkv": pack_projection([wq, wkv], [bq, bkv], mxu_dtype=mxu_dtype, max_tk=max_tk),
        # Separate packings for the cross-attention path.
        "q": pack_projection([wq], [bq], mxu_dtype=mxu_dtype, max_tk=max_tk),
        "kv": pack_projection([wkv], [bkv], mxu_dtype=mxu_dtype, max_tk=max_tk),
    }


def linear_projection(params, x, heads, attn_kv=None, *, tm_max=512):
    """Matches LinearProjection.forward.

    x: (B, N, C); attn_kv: optional (N_kv, C) shared memory (repeated over batch).
    Returns q (B, heads, N, C//heads) and k, v (B, heads, N_kv, C//heads).
    """
    B, N, C = x.shape
    inner = params["inner"]
    head_dim = C // heads
    assert inner == heads * head_dim, (inner, heads, head_dim)

    if attn_kv is None:
        # Fused q/k/v projection: one lane-dense matmul over 3*inner columns.
        out = matmul_bias_packed(x.reshape(B * N, C), params["qkv"], tm_max=tm_max)
        out = out.reshape(B, N, 3 * inner)
        q = out[..., :inner]
        k = out[..., inner:2 * inner]
        v = out[..., 2 * inner:]
        N_kv = N
    else:
        attn_kv = jnp.asarray(attn_kv)
        if attn_kv.ndim != 2 or attn_kv.shape[-1] != C:
            raise ValueError(
                f"attn_kv must be 2-D (N_kv, C) shared across the batch, got {attn_kv.shape}")
        N_kv = attn_kv.shape[0]
        # TODO(synk): on v7x with tiny N_kv the two matmuls below could be fused
        # into one call so both TensorCores stay fed; kept separate for clarity.
        q = matmul_bias_packed(x.reshape(B * N, C), params["q"], tm_max=tm_max)
        q = q.reshape(B, N, inner)
        kv = matmul_bias_packed(attn_kv, params["kv"], tm_max=tm_max)     # (N_kv, 2*inner)
        kv = jnp.broadcast_to(kv[None], (B, N_kv, 2 * inner))
        k = kv[..., :inner]
        v = kv[..., inner:]

    # Head split + permute (layout glue, outside the kernel).
    q = q.reshape(B, N, heads, head_dim).transpose(0, 2, 1, 3)
    k = k.reshape(B, N_kv, heads, head_dim).transpose(0, 2, 1, 3)
    v = v.reshape(B, N_kv, heads, head_dim).transpose(0, 2, 1, 3)
    return q, k, v


# ---------------------------------------------------------------------------
# Pure-JAX reference (mirrors the PyTorch forward exactly).
# ---------------------------------------------------------------------------

def _reference(x, wq, bq, wkv, bkv, heads, attn_kv=None):
    B, N, C = x.shape
    hd = C // heads
    if attn_kv is None:
        kv_in = x
    else:
        kv_in = jnp.broadcast_to(attn_kv[None], (B,) + attn_kv.shape)
    N_kv = kv_in.shape[1]
    q = x @ wq.T + bq
    kv = kv_in @ wkv.T + bkv
    q = q.reshape(B, N, 1, heads, hd).transpose(2, 0, 3, 1, 4)[0]
    kv = kv.reshape(B, N_kv, 2, heads, hd).transpose(2, 0, 3, 1, 4)
    return q, kv[0], kv[1]


if __name__ == "__main__":
    # Small shapes consistent with the module: dim == heads * dim_head.
    B, N, dim = 2, 8, 32
    heads, dim_head = 4, 8
    inner = heads * dim_head
    N_kv_cross = 5

    key = jax.random.PRNGKey(0)
    kx, kwq, kbq, kwkv, kbkv, kkv = jax.random.split(key, 6)

    x = jax.random.normal(kx, (B, N, dim), jnp.float32)
    wq = jax.random.normal(kwq, (inner, dim), jnp.float32) * 0.1
    bq = jax.random.normal(kbq, (inner,), jnp.float32) * 0.1
    wkv = jax.random.normal(kwkv, (2 * inner, dim), jnp.float32) * 0.1
    bkv = jax.random.normal(kbkv, (2 * inner,), jnp.float32) * 0.1
    attn_kv = jax.random.normal(kkv, (N_kv_cross, dim), jnp.float32)

    # ---- bf16 MXU path (default) -------------------------------------------
    params_bf16 = init_linear_projection(wq, bq, wkv, bkv, mxu_dtype=jnp.bfloat16)

    q, k, v = linear_projection(params_bf16, x, heads)
    q, k, v = map(jax.block_until_ready, (q, k, v))
    q_ref, k_ref, v_ref = _reference(x, wq, bq, wkv, bkv, heads)

    assert q.shape == (B, heads, N, dim // heads), q.shape
    assert k.shape == (B, heads, N, dim // heads), k.shape
    assert v.shape == (B, heads, N, dim // heads), v.shape
    # bf16 MXU feed -> relaxed tolerance vs the f32 reference.
    np.testing.assert_allclose(np.asarray(q), np.asarray(q_ref), rtol=2e-2, atol=2e-2)
    np.testing.assert_allclose(np.asarray(k), np.asarray(k_ref), rtol=2e-2, atol=2e-2)
    np.testing.assert_allclose(np.asarray(v), np.asarray(v_ref), rtol=2e-2, atol=2e-2)

    # Cross-attention path (shared (N_kv, C) memory).
    q2, k2, v2 = linear_projection(params_bf16, x, heads, attn_kv=attn_kv)
    q2, k2, v2 = map(jax.block_until_ready, (q2, k2, v2))
    q2_ref, k2_ref, v2_ref = _reference(x, wq, bq, wkv, bkv, heads, attn_kv=attn_kv)
    assert k2.shape == (B, heads, N_kv_cross, dim // heads), k2.shape
    np.testing.assert_allclose(np.asarray(q2), np.asarray(q2_ref), rtol=2e-2, atol=2e-2)
    np.testing.assert_allclose(np.asarray(k2), np.asarray(k2_ref), rtol=2e-2, atol=2e-2)
    np.testing.assert_allclose(np.asarray(v2), np.asarray(v2_ref), rtol=2e-2, atol=2e-2)

    # ---- exact f32 path sanity check ----------------------------------------
    params_f32 = init_linear_projection(wq, bq, wkv, bkv, mxu_dtype=jnp.float32)
    q3, k3, v3 = linear_projection(params_f32, x, heads)
    q3, k3, v3 = map(jax.block_until_ready, (q3, k3, v3))
    np.testing.assert_allclose(np.asarray(q3), np.asarray(q_ref), rtol=1e-4, atol=1e-4)
    np.testing.assert_allclose(np.asarray(k3), np.asarray(k_ref), rtol=1e-4, atol=1e-4)
    np.testing.assert_allclose(np.asarray(v3), np.asarray(v_ref), rtol=1e-4, atol=1e-4)

    print("KERNEL_OK")
</pallas_src>

<mosaic_0001>
module attributes {stable_mosaic.version = 11 : i64} {
  func.func @kernel(%arg0: i32, %arg1: i32, %arg2: i32, %arg3: memref<16x32xf32, #tpu.memory_space<vmem>>, %arg4: memref<32x128xbf16, #tpu.memory_space<vmem>>, %arg5: memref<1x128xf32, #tpu.memory_space<vmem>>, %arg6: memref<16x128xf32, #tpu.memory_space<vmem>>, %arg7: memref<16x128xf32, #tpu.memory_space<vmem>>) attributes {dimension_semantics = [#tpu.dimension_semantics<parallel>, #tpu.dimension_semantics<parallel>, #tpu.dimension_semantics<arbitrary>], iteration_bounds = array<i64: 1, 1, 1>, scalar_prefetch = 0 : i64, scratch_operands = 1 : i64, tpu.core_type = #tpu.core_type<tc>, window_params = [{transform_indices = @transform_0, window_bounds = array<i64: 16, 32>}, {transform_indices = @transform_1, window_bounds = array<i64: 32, 128>}, {transform_indices = @transform_2, window_bounds = array<i64: 1, 128>}, {transform_indices = @transform_3, window_bounds = array<i64: 16, 128>}]} {
    %c0_i32 = arith.constant 0 : i32
    %0 = arith.cmpi eq, %arg2, %c0_i32 : i32
    %1 = arith.extui %0 : i1 to i32
    %c0_i32_0 = arith.constant 0 : i32
    %2 = arith.cmpi ne, %1, %c0_i32_0 : i32
    scf.if %2 {
      %cst_10 = arith.constant 0.000000e+00 : f32
      %13 = vector.broadcast %cst_10 : f32 to vector<16x128xf32>
      %c0_11 = arith.constant 0 : index
      %c0_12 = arith.constant 0 : index
      %14 = vector.load %arg7[%c0_11, %c0_12] : memref<16x128xf32, #tpu.memory_space<vmem>>, vector<16x128xf32>
      tpu.vector_store %arg7[%c0_11, %c0_12], %13 {strides = array<i32>} : memref<16x128xf32, #tpu.memory_space<vmem>>, vector<16x128xf32>,
    } else {
    }
    %c0 = arith.constant 0 : index
    %c0_1 = arith.constant 0 : index
    %3 = vector.load %arg7[%c0, %c0_1] : memref<16x128xf32, #tpu.memory_space<vmem>>, vector<16x128xf32>
    %c0_2 = arith.constant 0 : index
    %c0_3 = arith.constant 0 : index
    %4 = vector.load %arg3[%c0_2, %c0_3] : memref<16x32xf32, #tpu.memory_space<vmem>>, vector<16x32xf32>
    %5 = arith.truncf %4 : vector<16x32xf32> to vector<16x32xbf16>
    %c0_4 = arith.constant 0 : index
    %c0_5 = arith.constant 0 : index
    %6 = vector.load %arg4[%c0_4, %c0_5] : memref<32x128xbf16, #tpu.memory_space<vmem>>, vector<32x128xbf16>
    %cst = arith.constant dense<0.000000e+00> : vector<16x128xf32>
    %7 = tpu.matmul %5, %6, %cst {dimension_numbers = #tpu.dot_dimension_numbers<[1], [0], [0], [1], [0, 0, 1, 1], [], []>} : vector<16x32xbf16>, vector<32x128xbf16>, vector<16x128xf32> -> vector<16x128xf32>
    %8 = arith.addf %3, %7 : vector<16x128xf32>
    %c0_6 = arith.constant 0 : index
    %c0_7 = arith.constant 0 : index
    %9 = vector.load %arg7[%c0_6, %c0_7] : memref<16x128xf32, #tpu.memory_space<vmem>>, vector<16x128xf32>
    tpu.vector_store %arg7[%c0_6, %c0_7], %8 {strides = array<i32>} : memref<16x128xf32, #tpu.memory_space<vmem>>, vector<16x128xf32>,
    %c0_i32_8 = arith.constant 0 : i32
    %10 = arith.cmpi eq, %arg2, %c0_i32_8 : i32
    %11 = arith.extui %10 : i1 to i32
    %c0_i32_9 = arith.constant 0 : i32
    %12 = arith.cmpi ne, %11, %c0_i32_9 : i32
    scf.if %12 {
      %c0_10 = arith.constant 0 : index
      %c0_11 = arith.constant 0 : index
      %13 = vector.load %arg7[%c0_10, %c0_11] : memref<16x128xf32, #tpu.memory_space<vmem>>, vector<16x128xf32>
      %c0_12 = arith.constant 0 : index
      %c0_13 = arith.constant 0 : index
      %14 = vector.load %arg5[%c0_12, %c0_13] : memref<1x128xf32, #tpu.memory_space<vmem>>, vector<1x128xf32>
      %15 = vector.broadcast %14 : vector<1x128xf32> to vector<16x128xf32>
      %16 = arith.addf %13, %15 : vector<16x128xf32>
      %c0_14 = arith.constant 0 : index
      %c0_15 = arith.constant 0 : index
      %17 = vector.load %arg6[%c0_14, %c0_15] : memref<16x128xf32, #tpu.memory_space<vmem>>, vector<16x128xf32>
      tpu.vector_store %arg6[%c0_14, %c0_15], %16 {strides = array<i32>} : memref<16x128xf32, #tpu.memory_space<vmem>>, vector<16x128xf32>,
    } else {
    }
    return
  }
  func.func @transform_0(%arg0: i32, %arg1: i32, %arg2: i32) -> (i32, i32) {
    %c0_i32 = arith.constant 0 : i32
    return %arg0, %arg2 : i32, i32
  }
  func.func @transform_1(%arg0: i32, %arg1: i32, %arg2: i32) -> (i32, i32) {
    %c0_i32 = arith.constant 0 : i32
    return %arg2, %arg1 : i32, i32
  }
  func.func @transform_2(%arg0: i32, %arg1: i32, %arg2: i32) -> (i32, i32) {
    %c0_i32 = arith.constant 0 : i32
    %c0_i32_0 = arith.constant 0 : i32
    return %c0_i32, %arg1 : i32, i32
  }
  func.func @transform_3(%arg0: i32, %arg1: i32, %arg2: i32) -> (i32, i32) {
    %c0_i32 = arith.constant 0 : i32
    return %arg0, %arg1 : i32, i32
  }
}

</mosaic_0001>

<llo_original>
// kernel: tpu_custom_call.1
$region0: #{tpu_custom_call.1}
  #allocation0 [shape = 'u32[]', space=smem, size = 0x4, offset = 0x4, fixed_abs, tag = 'smem constant byte address 0x4 - core index']
  #allocation1 [shape = 'u32[144,128]{1,0:T(1,128)}', space=vmem, size = 0x12000, scoped, tag = 'internal scratch']
  #allocation2 [shape = 'f32[16,128]{1,0:T(8,128)}', space=vmem, size = 0x2000, scoped, tag = 'scratch operand']
  %s0 = inlined_call_operand.hbm [shape: f32[16,32], index: 0, kind: input, shape index: {}]
  %s1 = inlined_call_operand.hbm [shape: bf16[32,128], index: 1, kind: input, shape index: {}]
  %s2 = inlined_call_operand.vmem [shape: f32[1,128], index: 2, kind: input, shape index: {}]
  %s3 = inlined_call_operand.hbm [shape: f32[16,128], index: 3, kind: output, shape index: {}]
  %s4 = sld [smem:[#allocation0]]
  $region38: #{tpu_custom_call.1} parent=0
    _
  %s6 = ssub.s32 1, %s4
  %s7 = scalar_select 0, %s6, %s4
  $region1: #{tpu_custom_call.1} parent=0
    #allocation3 [shape = 'u8[8192]{0}', space=vmem, size = 0x2000, scoped, tag = 'input window, operand 0, single buffered']
    #allocation4 [shape = 's32[1]{0}', space=sflag, size = 0x4, scoped, tag = 'scoped memory for tpu_custom_call.1']
    #allocation5 [shape = 's32[1]{0}', space=sflag, size = 0x4, scoped, tag = 'scoped memory for tpu_custom_call.1']
    #allocation6 [shape = 'u8[8192]{0}', space=vmem, size = 0x2000, scoped, tag = 'input window, operand 1, single buffered']
    #allocation7 [shape = 's32[1]{0}', space=sflag, size = 0x4, scoped, tag = 'scoped memory for tpu_custom_call.1']
    #allocation8 [shape = 'u8[8192]{0}', space=vmem, size = 0x2000, scoped, tag = 'output window, operand 0, single buffered']
    %8 = vsyncpa [#allocation4], 0
    %9 = vsyncpa [#allocation7], 0
    %10 = vsyncpa [#allocation5], 0
    // Predicated region
    $region2: #{tpu_custom_call.1} parent=1 // pred_check
      _
    $region3: #{tpu_custom_call.1} parent=1 // pred_check_branch
      %12 = sbr.rel (0) target = $region5
    $region4: #{tpu_custom_call.1} parent=1 // pred_region
      %s14 = ssub.s32 256, 256
      %15 = vsyncadd [#allocation4], %s14
      %s16 = sshll.u32 [#allocation3], 4
      %s17 = int_to_ptr.vmem [resolvable:$true] %s16
      %22 = dma.hbm_to_vmem [thread:$0]  %s0, 256, %s17, [#allocation4], 128, 128, 8
    $region5: #{tpu_custom_call.1} parent=1 // pred_fallthru
      _
    // Predicated region
    $region6: #{tpu_custom_call.1} parent=1 // pred_check
      _
    $region7: #{tpu_custom_call.1} parent=1 // pred_check_branch
      %24 = sbr.rel (0) target = $region9
    $region8: #{tpu_custom_call.1} parent=1 // pred_region
      %s26 = ssub.s32 256, 256
      %27 = vsyncadd [#allocation7], %s26
      %s28 = sshll.u32 [#allocation6], 4
      %s29 = int_to_ptr.vmem [resolvable:$true] %s28
      %34 = dma.hbm_to_vmem [thread:$0]  %s1, 256, %s29, [#allocation7], 64, 64, 4
    $region9: #{tpu_custom_call.1} parent=1 // pred_fallthru
      _
    // Predicated region
    $region10: #{tpu_custom_call.1} parent=1 // pred_check
      _
    $region11: #{tpu_custom_call.1} parent=1 // pred_check_branch
      %36 = sbr.rel (0) target = $region13
    $region12: #{tpu_custom_call.1} parent=1 // pred_region
      _
    $region13: #{tpu_custom_call.1} parent=1 // pred_fallthru
      _
    // Predicated region
    $region14: #{tpu_custom_call.1} parent=1 // pred_check
      _
    $region15: #{tpu_custom_call.1} parent=1 // pred_check_branch
      %38 = sbr.rel (0) target = $region17
    $region16: #{tpu_custom_call.1} parent=1 // pred_region
      %39 = dma.done [#allocation4], 256
    $region17: #{tpu_custom_call.1} parent=1 // pred_fallthru
      _
    // Predicated region
    $region18: #{tpu_custom_call.1} parent=1 // pred_check
      _
    $region19: #{tpu_custom_call.1} parent=1 // pred_check_branch
      %41 = sbr.rel (0) target = $region21
    $region20: #{tpu_custom_call.1} parent=1 // pred_region
      %42 = dma.done [#allocation7], 256
    $region21: #{tpu_custom_call.1} parent=1 // pred_fallthru
      _
    %p44 = scmp.eq.s32.totalorder 0, 0
    // Predicated region
    $region22: #{tpu_custom_call.1} parent=1 // pred_check
      %p45 = pneg %p44
    $region23: #{tpu_custom_call.1} parent=1 // pred_check_branch
      %47 = sbr.rel (%p45) target = $region25
    $region24: #{tpu_custom_call.1} parent=1 // pred_region
      %48 = vst [vmem:[#allocation2] sm:$0xff] 0.0
      %49 = vst [vmem:[#allocation2 + $0x8] sm:$0xff] 0.0
    $region25: #{tpu_custom_call.1} parent=1 // pred_fallthru
      _
    %v50 = vld [vmem:[#allocation2] sm:$0xff]
    %v51 = vld [vmem:[#allocation2 + $0x8] sm:$0xff]
    %v52 = vld [vmem:[#allocation3] sm:$0xff]
    %v53 = vld [vmem:[#allocation3 + $0x8] sm:$0xff]
    %v54 = vpack.c.bf16 %v53, %v52
    %v55 = vld [vmem:[#allocation6] sm:$0xf]
    %v56 = vld [vmem:[#allocation6 + $0x4] sm:$0xf]
    %v57 = vld [vmem:[#allocation6 + $0x8] sm:$0xf]
    %v58 = vld [vmem:[#allocation6 + $0xc] sm:$0xf]
    %v63 = vunpack.c.l.b16 %v55
    %v64 = vunpack.c.l.b16 %v56
    %v65 = vunpack.c.l.b16 %v57
    %v66 = vunpack.c.l.b16 %v58
    %v67 = vpack.c.b16 %v64, %v63
    %v68 = vpack.c.b16 %v66, %v65
    %vm71 = vcmask 261120
    %v73 = vsel %vm71, %v54, 0
    %75 = vmatprep.subr.bf16.mxu0 0
    %76 = vmatpush1.bf16.msra.mxu0 %v67
    %77 = vmatprep.subr.bf16.mxu0 0
    %78 = vmatpush1.bf16.msra.mxu0 %v68
    %79 = vmatprep.subr.bf16.mxu0 0
    %80 = vmatpush1.bf16.msra.mxu0 0
    %81 = vmatprep.subr.bf16.mxu0 0
    %82 = vmatpush1.bf16.msra.mxu0 0
    %83 = vmatprep.subr.bf16.mxu0 0
    %84 = vmatpush1.bf16.msra.mxu0 0
    %85 = vmatprep.subr.bf16.mxu0 0
    %86 = vmatpush1.bf16.msra.mxu0 0
    %87 = vmatprep.subr.bf16.mxu0 0
    %88 = vmatpush1.bf16.msra.mxu0 0
    %89 = vmatprep.subr.bf16.mxu0 0
    %90 = vmatpush1.bf16.msra.mxu0 0
    %91 = vmatprep.subr.bf16.mxu0 0
    %92 = vmatpush1.bf16.msra.mxu0 0
    %93 = vmatprep.subr.bf16.mxu0 0
    %94 = vmatpush1.bf16.msra.mxu0 0
    %95 = vmatprep.subr.bf16.mxu0 0
    %96 = vmatpush1.bf16.msra.mxu0 0
    %97 = vmatprep.subr.bf16.mxu0 0
    %98 = vmatpush1.bf16.msra.mxu0 0
    %99 = vmatprep.subr.bf16.mxu0 0
    %100 = vmatpush1.bf16.msra.mxu0 0
    %101 = vmatprep.subr.bf16.mxu0 0
    %102 = vmatpush1.bf16.msra.mxu0 0
    %103 = vmatprep.subr.bf16.mxu0 0
    %104 = vmatpush1.bf16.msra.mxu0 0
    %105 = vmatprep.subr.bf16.mxu0 0
    %106 = vmatpush1.bf16.msra.mxu0 0
    %107 = vmatprep.mubr.bf16.mxu0 0
    %108 = vmatmul.mubr.bf16.gmra.mrb[0].mxu0 %v73
    %v109 = vpop.f32.mrb[0].mxu0
    %v110 = vadd.f32 0.0, %v109
    %v111 = vpop.f32.mrb[0].mxu0
    %v112 = vpop.f32.mrb[0].mxu0
    %v113 = vadd.f32 0.0, %v112
    %v114 = vpop.f32.mrb[0].mxu0
    %115 = vdwg.mxu0
    %v116 = vadd.f32 %v50, %v110
    %v117 = vadd.f32 %v51, %v113
    %118 = vst [vmem:[#allocation2] sm:$0xff] %v116
    %119 = vst [vmem:[#allocation2 + $0x8] sm:$0xff] %v117
    // Predicated region
    $region26: #{tpu_custom_call.1} parent=1 // pred_check
      %p120 = pneg %p44
    $region27: #{tpu_custom_call.1} parent=1 // pred_check_branch
      %122 = sbr.rel (%p120) target = $region29
    $region28: #{tpu_custom_call.1} parent=1 // pred_region
      %v123 = vld [vmem:[#allocation2] sm:$0xff]
      %v124 = vld [vmem:[#allocation2 + $0x8] sm:$0xff]
      %v125 = vld [vmem:[%s2] sm:$0x1]
      %v127 = vlaneseq
      %v128 = vshrl.u32 %v127, 7
      %v129 = vsub.s32 0, %v128
      %v130 = vrot.slane %v125, %v129
      %v132 = vadd.f32 %v123, %v130
      %v133 = vadd.f32 %v124, %v130
      %134 = vst [vmem:[#allocation8] sm:$0xff] %v132
      %135 = vst [vmem:[#allocation8 + $0x8] sm:$0xff] %v133
    $region29: #{tpu_custom_call.1} parent=1 // pred_fallthru
      _
    // Predicated region
    $region30: #{tpu_custom_call.1} parent=1 // pred_check
      _
    $region31: #{tpu_custom_call.1} parent=1 // pred_check_branch
      %137 = sbr.rel (0) target = $region33
    $region32: #{tpu_custom_call.1} parent=1 // pred_region
      %s139 = ssub.s32 256, 256
      %140 = vsyncadd [#allocation5], %s139
      %s141 = sshll.u32 [#allocation8], 4
      %s142 = int_to_ptr.vmem [resolvable:$true] %s141
      %147 = dma.vmem_to_hbm [thread:$0]  %s142, 256, %s3, [#allocation5], 128, 128, 8
    $region33: #{tpu_custom_call.1} parent=1 // pred_fallthru
      _
    // Predicated region
    $region34: #{tpu_custom_call.1} parent=1 // pred_check
      _
    $region35: #{tpu_custom_call.1} parent=1 // pred_check_branch
      %149 = sbr.rel (0) target = $region37
    $region36: #{tpu_custom_call.1} parent=1 // pred_region
      %150 = dma.done [#allocation5], 256
    $region37: #{tpu_custom_call.1} parent=1 // pred_fallthru
      _
    %151 = vsyncpa [#allocation4], 1
    %152 = vsyncpa [#allocation7], 1
    %153 = vsyncpa [#allocation5], 1

</llo_original>
